<compile_context>
chip_gen: v5e
topology: v5e:2x2
jax: 0.10.0
libtpu: 0.0.40
codegen_flags: <defaults>
</compile_context>

<pallas_src>
import jax
import jax.numpy as jnp
from jax.experimental import pallas as pl
from jax.experimental.pallas import tpu as pltpu


def _round_up(x, m):
    return ((x + m - 1) // m) * m


def _cdiv(a, b):
    return -(-a // b)


def encoder_kernel(x_ref, w1_ref, b1_ref, w2_ref, b2_ref,
                   wmu_ref, bmu_ref, wlv_ref, blv_ref,
                   mu_ref, logvar_ref):
    # Full f32 math: MXU matmuls with f32 accumulation, bias/ReLU on the VPU.
    x = x_ref[...]
    h1 = jnp.dot(x, w1_ref[...], preferred_element_type=jnp.float32) + b1_ref[...]
    h1 = jnp.maximum(h1, 0.0)
    h2 = jnp.dot(h1, w2_ref[...], preferred_element_type=jnp.float32) + b2_ref[...]
    h2 = jnp.maximum(h2, 0.0)
    mu_ref[...] = (jnp.dot(h2, wmu_ref[...],
                           preferred_element_type=jnp.float32) + bmu_ref[...])
    logvar_ref[...] = (jnp.dot(h2, wlv_ref[...],
                               preferred_element_type=jnp.float32) + blv_ref[...])


def encoder_forward(x, params, latent_dim, *, block_rows=2048):
    """x: (B, input_dim) f32.  Returns (mu, logvar), each (B, latent_dim) f32."""
    B, input_dim = x.shape
    w1, b1 = params["w1"], params["b1"]
    w2, b2 = params["w2"], params["b2"]
    wmu, bmu = params["wmu"], params["bmu"]
    wlv, blv = params["wlv"], params["blv"]
    assert w1.shape[0] == input_dim

    # Grid / row-tile selection (see header): bounded padding, large tiles,
    # and >= 2 (even) grid steps when the batch allows (v7x megacore).
    grid_n = max(1, _cdiv(B, block_rows))
    if grid_n == 1 and B >= 16:
        grid_n = 2
    if grid_n > 1 and grid_n % 2:
        grid_n += 1
    tm = _round_up(_cdiv(B, grid_n), 8)
    B_pad = grid_n * tm
    if B_pad != B:
        x = jnp.pad(x, ((0, B_pad - B), (0, 0)))

    def const_spec(arr):
        return pl.BlockSpec(arr.shape, lambda i: (0, 0))   # VMEM-resident

    in_specs = [
        pl.BlockSpec((tm, input_dim), lambda i: (i, 0)),    # x tiles over batch
        const_spec(w1), const_spec(b1),
        const_spec(w2), const_spec(b2),
        const_spec(wmu), const_spec(bmu),
        const_spec(wlv), const_spec(blv),
    ]
    out_specs = [
        pl.BlockSpec((tm, latent_dim), lambda i: (i, 0)),
        pl.BlockSpec((tm, latent_dim), lambda i: (i, 0)),
    ]
    out_shape = [
        jax.ShapeDtypeStruct((B_pad, latent_dim), jnp.float32),
        jax.ShapeDtypeStruct((B_pad, latent_dim), jnp.float32),
    ]

    flops = 2 * B_pad * (w1.shape[0] * w1.shape[1]
                         + w2.shape[0] * w2.shape[1]
                         + 2 * wmu.shape[0] * wmu.shape[1])
    bytes_accessed = (
        x.size * x.dtype.itemsize
        + sum(a.size * a.dtype.itemsize
              for a in (w1, b1, w2, b2, wmu, bmu, wlv, blv))
        + 2 * B_pad * latent_dim * 4
    )

    mu, logvar = pl.pallas_call(
        encoder_kernel,
        out_shape=out_shape,
        grid=(grid_n,),
        in_specs=in_specs,
        out_specs=out_specs,
        compiler_params=pltpu.CompilerParams(dimension_semantics=("parallel",)),
        cost_estimate=pl.CostEstimate(flops=flops, transcendentals=0,
                                      bytes_accessed=bytes_accessed),
    )(x, w1, b1, w2, b2, wmu, bmu, wlv, blv)

    if B_pad != B:
        mu, logvar = mu[:B], logvar[:B]
    return mu, logvar


def init_encoder_params(key, input_dim, hidden_dim, latent_dim):
    """Matches PyTorch _initialize_weights: N(0, 0.1) weights, zero biases.

    Weights are stored (in, out) in float32 (same dtype as the PyTorch module).
    Hidden output dims are zero-padded to a multiple of 128 so h1/h2 are
    lane-dense vregs; the mu/logvar outputs are kept at exactly latent_dim
    wide (no 128-lane padding -- it would only waste HBM write bandwidth)."""
    k1, k2, k3, k4 = jax.random.split(key, 4)
    std = 0.1
    h0, h1 = hidden_dim
    h0p = _round_up(h0, 128)
    h1p = _round_up(h1, 128)

    w1 = std * jax.random.normal(k1, (input_dim, h0), jnp.float32)
    w2 = std * jax.random.normal(k2, (h0, h1), jnp.float32)
    wmu = std * jax.random.normal(k3, (h1, latent_dim), jnp.float32)
    wlv = std * jax.random.normal(k4, (h1, latent_dim), jnp.float32)

    w1p = jnp.zeros((input_dim, h0p), jnp.float32).at[:, :h0].set(w1)
    w2p = jnp.zeros((h0p, h1p), jnp.float32).at[:h0, :h1].set(w2)
    wmup = jnp.zeros((h1p, latent_dim), jnp.float32).at[:h1, :].set(wmu)
    wlvp = jnp.zeros((h1p, latent_dim), jnp.float32).at[:h1, :].set(wlv)

    return {
        "w1": w1p, "b1": jnp.zeros((1, h0p), jnp.float32),
        "w2": w2p, "b2": jnp.zeros((1, h1p), jnp.float32),
        "wmu": wmup, "bmu": jnp.zeros((1, latent_dim), jnp.float32),
        "wlv": wlvp, "blv": jnp.zeros((1, latent_dim), jnp.float32),
        # unpadded f32 copies, used only by the pure-JAX reference
        "_ref": {"w1": w1, "w2": w2, "wmu": wmu, "wlv": wlv},
    }


def encoder_ref(x, params):
    """Pure-JAX f32 reference mirroring the PyTorch forward (biases are zero)."""
    r = params["_ref"]
    hp = jax.lax.Precision.HIGHEST
    h1 = jnp.maximum(jnp.dot(x, r["w1"], precision=hp), 0.0)
    h2 = jnp.maximum(jnp.dot(h1, r["w2"], precision=hp), 0.0)
    mu = jnp.dot(h2, r["wmu"], precision=hp)
    logvar = jnp.dot(h2, r["wlv"], precision=hp)
    return mu, logvar


if __name__ == "__main__":
    key = jax.random.PRNGKey(0)
    kx, kx2, kp = jax.random.split(key, 3)

    batch = 8
    input_dim = 32
    hidden_dim = (64, 32)
    latent_dim = 16

    params = init_encoder_params(kp, input_dim, hidden_dim, latent_dim)

    # Small batch: single grid step.
    x = jax.random.normal(kx, (batch, input_dim), dtype=jnp.float32)
    mu, logvar = encoder_forward(x, params, latent_dim)
    jax.block_until_ready((mu, logvar))
    mu_r, lv_r = encoder_ref(x, params)
    assert mu.shape == (batch, latent_dim) and logvar.shape == (batch, latent_dim)
    assert jnp.allclose(mu, mu_r, atol=1e-2, rtol=1e-2), "mu mismatch"
    assert jnp.allclose(logvar, lv_r, atol=1e-2, rtol=1e-2), "logvar mismatch"

    # Awkward batch: exercises row padding + the 2-step "parallel" grid path.
    x2 = jax.random.normal(kx2, (37, input_dim), dtype=jnp.float32)
    mu2, lv2 = encoder_forward(x2, params, latent_dim)
    jax.block_until_ready((mu2, lv2))
    mu2_r, lv2_r = encoder_ref(x2, params)
    assert mu2.shape == (37, latent_dim) and lv2.shape == (37, latent_dim)
    assert jnp.allclose(mu2, mu2_r, atol=1e-2, rtol=1e-2), "mu mismatch (padded)"
    assert jnp.allclose(lv2, lv2_r, atol=1e-2, rtol=1e-2), "logvar mismatch (padded)"

    print("KERNEL_OK")
</pallas_src>

<mosaic_0001>
module attributes {stable_mosaic.version = 11 : i64} {
  func.func @encoder_kernel(%arg0: i32, %arg1: memref<8x32xf32, #tpu.memory_space<vmem>>, %arg2: memref<32x128xf32, #tpu.memory_space<vmem>>, %arg3: memref<1x128xf32, #tpu.memory_space<vmem>>, %arg4: memref<128x128xf32, #tpu.memory_space<vmem>>, %arg5: memref<1x128xf32, #tpu.memory_space<vmem>>, %arg6: memref<128x16xf32, #tpu.memory_space<vmem>>, %arg7: memref<1x16xf32, #tpu.memory_space<vmem>>, %arg8: memref<128x16xf32, #tpu.memory_space<vmem>>, %arg9: memref<1x16xf32, #tpu.memory_space<vmem>>, %arg10: memref<8x16xf32, #tpu.memory_space<vmem>>, %arg11: memref<8x16xf32, #tpu.memory_space<vmem>>) attributes {dimension_semantics = [#tpu.dimension_semantics<parallel>], iteration_bounds = array<i64: 1>, scalar_prefetch = 0 : i64, scratch_operands = 0 : i64, tpu.core_type = #tpu.core_type<tc>, window_params = [{transform_indices = @transform_0, window_bounds = array<i64: 8, 32>}, {pipeline_mode = #tpu.pipeline_mode<synchronous>, transform_indices = @transform_1, window_bounds = array<i64: 32, 128>}, {pipeline_mode = #tpu.pipeline_mode<synchronous>, transform_indices = @transform_2, window_bounds = array<i64: 1, 128>}, {pipeline_mode = #tpu.pipeline_mode<synchronous>, transform_indices = @transform_3, window_bounds = array<i64: 128, 128>}, {pipeline_mode = #tpu.pipeline_mode<synchronous>, transform_indices = @transform_4, window_bounds = array<i64: 1, 128>}, {pipeline_mode = #tpu.pipeline_mode<synchronous>, transform_indices = @transform_5, window_bounds = array<i64: 128, 16>}, {pipeline_mode = #tpu.pipeline_mode<synchronous>, transform_indices = @transform_6, window_bounds = array<i64: 1, 16>}, {pipeline_mode = #tpu.pipeline_mode<synchronous>, transform_indices = @transform_7, window_bounds = array<i64: 128, 16>}, {pipeline_mode = #tpu.pipeline_mode<synchronous>, transform_indices = @transform_8, window_bounds = array<i64: 1, 16>}, {transform_indices = @transform_9, window_bounds = array<i64: 8, 16>}, {transform_indices = @transform_10, window_bounds = array<i64: 8, 16>}]} {
    %c0 = arith.constant 0 : index
    %c0_0 = arith.constant 0 : index
    %0 = vector.load %arg1[%c0, %c0_0] : memref<8x32xf32, #tpu.memory_space<vmem>>, vector<8x32xf32>
    %c0_1 = arith.constant 0 : index
    %c0_2 = arith.constant 0 : index
    %1 = vector.load %arg2[%c0_1, %c0_2] : memref<32x128xf32, #tpu.memory_space<vmem>>, vector<32x128xf32>
    %cst = arith.constant dense<0.000000e+00> : vector<8x128xf32>
    %2 = tpu.matmul %0, %1, %cst {dimension_numbers = #tpu.dot_dimension_numbers<[1], [0], [0], [1], [0, 0, 1, 1], [], []>} : vector<8x32xf32>, vector<32x128xf32>, vector<8x128xf32> -> vector<8x128xf32>
    %c0_3 = arith.constant 0 : index
    %c0_4 = arith.constant 0 : index
    %3 = vector.load %arg3[%c0_3, %c0_4] : memref<1x128xf32, #tpu.memory_space<vmem>>, vector<1x128xf32>
    %4 = vector.broadcast %3 : vector<1x128xf32> to vector<8x128xf32>
    %5 = arith.addf %2, %4 : vector<8x128xf32>
    %cst_5 = arith.constant 0.000000e+00 : f32
    %6 = vector.broadcast %cst_5 : f32 to vector<8x128xf32>
    %7 = arith.maximumf %5, %6 : vector<8x128xf32>
    %c0_6 = arith.constant 0 : index
    %c0_7 = arith.constant 0 : index
    %8 = vector.load %arg4[%c0_6, %c0_7] : memref<128x128xf32, #tpu.memory_space<vmem>>, vector<128x128xf32>
    %cst_8 = arith.constant dense<0.000000e+00> : vector<8x128xf32>
    %9 = tpu.matmul %7, %8, %cst_8 {dimension_numbers = #tpu.dot_dimension_numbers<[1], [0], [0], [1], [0, 0, 1, 1], [], []>} : vector<8x128xf32>, vector<128x128xf32>, vector<8x128xf32> -> vector<8x128xf32>
    %c0_9 = arith.constant 0 : index
    %c0_10 = arith.constant 0 : index
    %10 = vector.load %arg5[%c0_9, %c0_10] : memref<1x128xf32, #tpu.memory_space<vmem>>, vector<1x128xf32>
    %11 = vector.broadcast %10 : vector<1x128xf32> to vector<8x128xf32>
    %12 = arith.addf %9, %11 : vector<8x128xf32>
    %cst_11 = arith.constant 0.000000e+00 : f32
    %13 = vector.broadcast %cst_11 : f32 to vector<8x128xf32>
    %14 = arith.maximumf %12, %13 : vector<8x128xf32>
    %c0_12 = arith.constant 0 : index
    %c0_13 = arith.constant 0 : index
    %15 = vector.load %arg6[%c0_12, %c0_13] : memref<128x16xf32, #tpu.memory_space<vmem>>, vector<128x16xf32>
    %cst_14 = arith.constant dense<0.000000e+00> : vector<8x16xf32>
    %16 = tpu.matmul %14, %15, %cst_14 {dimension_numbers = #tpu.dot_dimension_numbers<[1], [0], [0], [1], [0, 0, 1, 1], [], []>} : vector<8x128xf32>, vector<128x16xf32>, vector<8x16xf32> -> vector<8x16xf32>
    %c0_15 = arith.constant 0 : index
    %c0_16 = arith.constant 0 : index
    %17 = vector.load %arg7[%c0_15, %c0_16] : memref<1x16xf32, #tpu.memory_space<vmem>>, vector<1x16xf32>
    %18 = vector.broadcast %17 : vector<1x16xf32> to vector<8x16xf32>
    %19 = arith.addf %16, %18 : vector<8x16xf32>
    %c0_17 = arith.constant 0 : index
    %c0_18 = arith.constant 0 : index
    %20 = vector.load %arg10[%c0_17, %c0_18] : memref<8x16xf32, #tpu.memory_space<vmem>>, vector<8x16xf32>
    tpu.vector_store %arg10[%c0_17, %c0_18], %19 {strides = array<i32>} : memref<8x16xf32, #tpu.memory_space<vmem>>, vector<8x16xf32>,
    %c0_19 = arith.constant 0 : index
    %c0_20 = arith.constant 0 : index
    %21 = vector.load %arg8[%c0_19, %c0_20] : memref<128x16xf32, #tpu.memory_space<vmem>>, vector<128x16xf32>
    %cst_21 = arith.constant dense<0.000000e+00> : vector<8x16xf32>
    %22 = tpu.matmul %14, %21, %cst_21 {dimension_numbers = #tpu.dot_dimension_numbers<[1], [0], [0], [1], [0, 0, 1, 1], [], []>} : vector<8x128xf32>, vector<128x16xf32>, vector<8x16xf32> -> vector<8x16xf32>
    %c0_22 = arith.constant 0 : index
    %c0_23 = arith.constant 0 : index
    %23 = vector.load %arg9[%c0_22, %c0_23] : memref<1x16xf32, #tpu.memory_space<vmem>>, vector<1x16xf32>
    %24 = vector.broadcast %23 : vector<1x16xf32> to vector<8x16xf32>
    %25 = arith.addf %22, %24 : vector<8x16xf32>
    %c0_24 = arith.constant 0 : index
    %c0_25 = arith.constant 0 : index
    %26 = vector.load %arg11[%c0_24, %c0_25] : memref<8x16xf32, #tpu.memory_space<vmem>>, vector<8x16xf32>
    tpu.vector_store %arg11[%c0_24, %c0_25], %25 {strides = array<i32>} : memref<8x16xf32, #tpu.memory_space<vmem>>, vector<8x16xf32>,
    return
  }
  func.func @transform_0(%arg0: i32) -> (i32, i32) {
    %c0_i32 = arith.constant 0 : i32
    %c0_i32_0 = arith.constant 0 : i32
    return %arg0, %c0_i32 : i32, i32
  }
  func.func @transform_1(%arg0: i32) -> (i32, i32) {
    %c0_i32 = arith.constant 0 : i32
    %c0_i32_0 = arith.constant 0 : i32
    %c0_i32_1 = arith.constant 0 : i32
    return %c0_i32, %c0_i32_0 : i32, i32
  }
  func.func @transform_2(%arg0: i32) -> (i32, i32) {
    %c0_i32 = arith.constant 0 : i32
    %c0_i32_0 = arith.constant 0 : i32
    %c0_i32_1 = arith.constant 0 : i32
    return %c0_i32, %c0_i32_0 : i32, i32
  }
  func.func @transform_3(%arg0: i32) -> (i32, i32) {
    %c0_i32 = arith.constant 0 : i32
    %c0_i32_0 = arith.constant 0 : i32
    %c0_i32_1 = arith.constant 0 : i32
    return %c0_i32, %c0_i32_0 : i32, i32
  }
  func.func @transform_4(%arg0: i32) -> (i32, i32) {
    %c0_i32 = arith.constant 0 : i32
    %c0_i32_0 = arith.constant 0 : i32
    %c0_i32_1 = arith.constant 0 : i32
    return %c0_i32, %c0_i32_0 : i32, i32
  }
  func.func @transform_5(%arg0: i32) -> (i32, i32) {
    %c0_i32 = arith.constant 0 : i32
    %c0_i32_0 = arith.constant 0 : i32
    %c0_i32_1 = arith.constant 0 : i32
    return %c0_i32, %c0_i32_0 : i32, i32
  }
  func.func @transform_6(%arg0: i32) -> (i32, i32) {
    %c0_i32 = arith.constant 0 : i32
    %c0_i32_0 = arith.constant 0 : i32
    %c0_i32_1 = arith.constant 0 : i32
    return %c0_i32, %c0_i32_0 : i32, i32
  }
  func.func @transform_7(%arg0: i32) -> (i32, i32) {
    %c0_i32 = arith.constant 0 : i32
    %c0_i32_0 = arith.constant 0 : i32
    %c0_i32_1 = arith.constant 0 : i32
    return %c0_i32, %c0_i32_0 : i32, i32
  }
  func.func @transform_8(%arg0: i32) -> (i32, i32) {
    %c0_i32 = arith.constant 0 : i32
    %c0_i32_0 = arith.constant 0 : i32
    %c0_i32_1 = arith.constant 0 : i32
    return %c0_i32, %c0_i32_0 : i32, i32
  }
  func.func @transform_9(%arg0: i32) -> (i32, i32) {
    %c0_i32 = arith.constant 0 : i32
    %c0_i32_0 = arith.constant 0 : i32
    return %arg0, %c0_i32 : i32, i32
  }
  func.func @transform_10(%arg0: i32) -> (i32, i32) {
    %c0_i32 = arith.constant 0 : i32
    %c0_i32_0 = arith.constant 0 : i32
    return %arg0, %c0_i32 : i32, i32
  }
}

</mosaic_0001>

<llo_original>
// kernel: tpu_custom_call.1
$region0: #{tpu_custom_call.1}
  #allocation0 [shape = 'u32[]', space=smem, size = 0x4, offset = 0x4, fixed_abs, tag = 'smem constant byte address 0x4 - core index']
  #allocation1 [shape = 'u32[72,128]{1,0:T(1,128)}', space=vmem, size = 0x9000, scoped, tag = 'internal scratch']
  %s0 = inlined_call_operand.vmem [shape: f32[8,32], index: 0, kind: input, shape index: {}]
  %s1 = inlined_call_operand.vmem [shape: f32[32,128], index: 1, kind: input, shape index: {}]
  %s2 = inlined_call_operand.vmem [shape: f32[1,128], index: 2, kind: input, shape index: {}]
  %s3 = inlined_call_operand.vmem [shape: f32[128,128], index: 3, kind: input, shape index: {}]
  %s4 = inlined_call_operand.vmem [shape: f32[1,128], index: 4, kind: input, shape index: {}]
  %s5 = inlined_call_operand.vmem [shape: f32[128,16], index: 5, kind: input, shape index: {}]
  %s6 = inlined_call_operand.vmem [shape: f32[1,16], index: 6, kind: input, shape index: {}]
  %s7 = inlined_call_operand.vmem [shape: f32[128,16], index: 7, kind: input, shape index: {}]
  %s8 = inlined_call_operand.vmem [shape: f32[1,16], index: 8, kind: input, shape index: {}]
  %s9 = inlined_call_operand.hbm [shape: f32[8,16], index: 9, kind: output, shape index: {0}]
  %s10 = inlined_call_operand.hbm [shape: f32[8,16], index: 10, kind: output, shape index: {1}]
  %11 = xla_tuple %s9, %s10
  %s12 = sld [smem:[#allocation0]]
  $region54: #{tpu_custom_call.1} parent=0
    _
  %s14 = ssub.s32 1, %s12
  %s15 = scalar_select 0, %s14, %s12
  $region1: #{tpu_custom_call.1} parent=0
    #allocation2 [shape = 'u8[4096]{0}', space=vmem, size = 0x1000, scoped, tag = 'output window, operand 0, single buffered']
    #allocation3 [shape = 's32[1]{0}', space=sflag, size = 0x4, scoped, tag = 'scoped memory for tpu_custom_call.1']
    #allocation4 [shape = 'u8[4096]{0}', space=vmem, size = 0x1000, scoped, tag = 'output window, operand 1, single buffered']
    #allocation5 [shape = 's32[1]{0}', space=sflag, size = 0x4, scoped, tag = 'scoped memory for tpu_custom_call.1']
    %16 = vsyncpa [#allocation3], 0
    %17 = vsyncpa [#allocation5], 0
    // Predicated region
    $region2: #{tpu_custom_call.1} parent=1 // pred_check
      _
    $region3: #{tpu_custom_call.1} parent=1 // pred_check_branch
      %19 = sbr.rel (0) target = $region5
    $region4: #{tpu_custom_call.1} parent=1 // pred_region
      _
    $region5: #{tpu_custom_call.1} parent=1 // pred_fallthru
      _
    // Predicated region
    $region6: #{tpu_custom_call.1} parent=1 // pred_check
      _
    $region7: #{tpu_custom_call.1} parent=1 // pred_check_branch
      %21 = sbr.rel (0) target = $region9
    $region8: #{tpu_custom_call.1} parent=1 // pred_region
      _
    $region9: #{tpu_custom_call.1} parent=1 // pred_fallthru
      _
    // Predicated region
    $region10: #{tpu_custom_call.1} parent=1 // pred_check
      _
    $region11: #{tpu_custom_call.1} parent=1 // pred_check_branch
      %23 = sbr.rel (0) target = $region13
    $region12: #{tpu_custom_call.1} parent=1 // pred_region
      _
    $region13: #{tpu_custom_call.1} parent=1 // pred_fallthru
      _
    // Predicated region
    $region14: #{tpu_custom_call.1} parent=1 // pred_check
      _
    $region15: #{tpu_custom_call.1} parent=1 // pred_check_branch
      %25 = sbr.rel (0) target = $region17
    $region16: #{tpu_custom_call.1} parent=1 // pred_region
      _
    $region17: #{tpu_custom_call.1} parent=1 // pred_fallthru
      _
    // Predicated region
    $region18: #{tpu_custom_call.1} parent=1 // pred_check
      _
    $region19: #{tpu_custom_call.1} parent=1 // pred_check_branch
      %27 = sbr.rel (0) target = $region21
    $region20: #{tpu_custom_call.1} parent=1 // pred_region
      _
    $region21: #{tpu_custom_call.1} parent=1 // pred_fallthru
      _
    // Predicated region
    $region22: #{tpu_custom_call.1} parent=1 // pred_check
      _
    $region23: #{tpu_custom_call.1} parent=1 // pred_check_branch
      %29 = sbr.rel (0) target = $region25
    $region24: #{tpu_custom_call.1} parent=1 // pred_region
      _
    $region25: #{tpu_custom_call.1} parent=1 // pred_fallthru
      _
    // Predicated region
    $region26: #{tpu_custom_call.1} parent=1 // pred_check
      _
    $region27: #{tpu_custom_call.1} parent=1 // pred_check_branch
      %31 = sbr.rel (0) target = $region29
    $region28: #{tpu_custom_call.1} parent=1 // pred_region
      _
    $region29: #{tpu_custom_call.1} parent=1 // pred_fallthru
      _
    // Predicated region
    $region30: #{tpu_custom_call.1} parent=1 // pred_check
      _
    $region31: #{tpu_custom_call.1} parent=1 // pred_check_branch
      %33 = sbr.rel (0) target = $region33
    $region32: #{tpu_custom_call.1} parent=1 // pred_region
      _
    $region33: #{tpu_custom_call.1} parent=1 // pred_fallthru
      _
    // Predicated region
    $region34: #{tpu_custom_call.1} parent=1 // pred_check
      _
    $region35: #{tpu_custom_call.1} parent=1 // pred_check_branch
      %35 = sbr.rel (0) target = $region37
    $region36: #{tpu_custom_call.1} parent=1 // pred_region
      _
    $region37: #{tpu_custom_call.1} parent=1 // pred_fallthru
      _
    %v36 = vld [vmem:[%s0] sm:$0xff]
    %v37 = vld [vmem:[%s1] sm:$0xff]
    %v38 = vld [vmem:[%s1 + $0x8] sm:$0xff]
    %v39 = vld [vmem:[%s1 + $0x10] sm:$0xff]
    %v40 = vld [vmem:[%s1 + $0x18] sm:$0xff]
    %v41 = vld [vmem:[%s2] sm:$0x1]
    %v43 = vperm.slane %v41, 0
    %vm45 = vcmask 261120
    %v47 = vsel %vm45, %v36, 0
    %49 = vmatpush.msra.mxu0 0.0
    %50 = vmatpush.msra.mxu0 0.0
    %51 = vmatpush.msra.mxu0 0.0
    %52 = vmatpush.msra.mxu0 0.0
    %53 = vmatpush.msra.mxu0 0.0
    %54 = vmatpush.msra.mxu0 0.0
    %55 = vmatpush.msra.mxu0 0.0
    %56 = vmatpush.msra.mxu0 0.0
    %57 = vmatpush.msra.mxu0 0.0
    %58 = vmatpush.msra.mxu0 0.0
    %59 = vmatpush.msra.mxu0 0.0
    %60 = vmatpush.msra.mxu0 0.0
    %61 = vmatpush.msra.mxu0 %v40
    %62 = vmatpush.msra.mxu0 %v39
    %63 = vmatpush.msra.mxu0 %v38
    %64 = vmatpush.msra.mxu0 %v37
    %65 = vmatmul.f32.gmra.mxu0 %v47
    %v66 = vpop.f32.mrf.mxu0
    %v67 = vadd.f32 %v43, %v66
    %68 = vdwg.mxu0
    %v69 = vmax.f32 %v67, 0.0
    %v70 = vld [vmem:[%s3] sm:$0xff]
    %v71 = vld [vmem:[%s3 + $0x8] sm:$0xff]
    %v72 = vld [vmem:[%s3 + $0x10] sm:$0xff]
    %v73 = vld [vmem:[%s3 + $0x18] sm:$0xff]
    %v74 = vld [vmem:[%s3 + $0x20] sm:$0xff]
    %v75 = vld [vmem:[%s3 + $0x28] sm:$0xff]
    %v76 = vld [vmem:[%s3 + $0x30] sm:$0xff]
    %v77 = vld [vmem:[%s3 + $0x38] sm:$0xff]
    %v78 = vld [vmem:[%s3 + $0x40] sm:$0xff]
    %v79 = vld [vmem:[%s3 + $0x48] sm:$0xff]
    %v80 = vld [vmem:[%s3 + $0x50] sm:$0xff]
    %v81 = vld [vmem:[%s3 + $0x58] sm:$0xff]
    %v82 = vld [vmem:[%s3 + $0x60] sm:$0xff]
    %v83 = vld [vmem:[%s3 + $0x68] sm:$0xff]
    %v84 = vld [vmem:[%s3 + $0x70] sm:$0xff]
    %v85 = vld [vmem:[%s3 + $0x78] sm:$0xff]
    %v86 = vld [vmem:[%s4] sm:$0x1]
    %v88 = vperm.slane %v86, 0
    %90 = vmatpush.msra.mxu0 %v85
    %91 = vmatpush.msra.mxu0 %v84
    %92 = vmatpush.msra.mxu0 %v83
    %93 = vmatpush.msra.mxu0 %v82
    %94 = vmatpush.msra.mxu0 %v81
    %95 = vmatpush.msra.mxu0 %v80
    %96 = vmatpush.msra.mxu0 %v79
    %97 = vmatpush.msra.mxu0 %v78
    %98 = vmatpush.msra.mxu0 %v77
    %99 = vmatpush.msra.mxu0 %v76
    %100 = vmatpush.msra.mxu0 %v75
    %101 = vmatpush.msra.mxu0 %v74
    %102 = vmatpush.msra.mxu0 %v73
    %103 = vmatpush.msra.mxu0 %v72
    %104 = vmatpush.msra.mxu0 %v71
    %105 = vmatpush.msra.mxu0 %v70
    %106 = vmatmul.f32.gmra.mxu0 %v69
    %v107 = vpop.f32.mrf.mxu0
    %v108 = vadd.f32 %v88, %v107
    %109 = vdwg.mxu0
    %v110 = vmax.f32 %v108, 0.0
    %v111 = vld [vmem:[%s5] sm:$0xff]
    %v112 = vld [vmem:[%s5 + $0x8] sm:$0xff]
    %v113 = vld [vmem:[%s5 + $0x10] sm:$0xff]
    %v114 = vld [vmem:[%s5 + $0x18] sm:$0xff]
    %v115 = vld [vmem:[%s5 + $0x20] sm:$0xff]
    %v116 = vld [vmem:[%s5 + $0x28] sm:$0xff]
    %v117 = vld [vmem:[%s5 + $0x30] sm:$0xff]
    %v118 = vld [vmem:[%s5 + $0x38] sm:$0xff]
    %v119 = vld [vmem:[%s5 + $0x40] sm:$0xff]
    %v120 = vld [vmem:[%s5 + $0x48] sm:$0xff]
    %v121 = vld [vmem:[%s5 + $0x50] sm:$0xff]
    %v122 = vld [vmem:[%s5 + $0x58] sm:$0xff]
    %v123 = vld [vmem:[%s5 + $0x60] sm:$0xff]
    %v124 = vld [vmem:[%s5 + $0x68] sm:$0xff]
    %v125 = vld [vmem:[%s5 + $0x70] sm:$0xff]
    %v126 = vld [vmem:[%s5 + $0x78] sm:$0xff]
    %v127 = vld [vmem:[%s6] sm:$0x1]
    %v129 = vperm.slane %v127, 0
    %131 = vmatpush.msra.mxu0 %v126
    %132 = vmatpush.msra.mxu0 %v125
    %133 = vmatpush.msra.mxu0 %v124
    %134 = vmatpush.msra.mxu0 %v123
    %135 = vmatpush.msra.mxu0 %v122
    %136 = vmatpush.msra.mxu0 %v121
    %137 = vmatpush.msra.mxu0 %v120
    %138 = vmatpush.msra.mxu0 %v119
    %139 = vmatpush.msra.mxu0 %v118
    %140 = vmatpush.msra.mxu0 %v117
    %141 = vmatpush.msra.mxu0 %v116
    %142 = vmatpush.msra.mxu0 %v115
    %143 = vmatpush.msra.mxu0 %v114
    %144 = vmatpush.msra.mxu0 %v113
    %145 = vmatpush.msra.mxu0 %v112
    %146 = vmatpush.msra.mxu0 %v111
    %147 = vmatmul.f32.gmra.mxu0 %v110
    %v148 = vpop.f32.mrf.mxu0
    %v149 = vadd.f32 %v129, %v148
    %150 = vdwg.mxu0
    %vm151 = vcmask 130048
    %152 = vst.msk [vmem:[#allocation2] sm:$0xff] %vm151, %v149
    %v153 = vld [vmem:[%s7] sm:$0xff]
    %v154 = vld [vmem:[%s7 + $0x8] sm:$0xff]
    %v155 = vld [vmem:[%s7 + $0x10] sm:$0xff]
    %v156 = vld [vmem:[%s7 + $0x18] sm:$0xff]
    %v157 = vld [vmem:[%s7 + $0x20] sm:$0xff]
    %v158 = vld [vmem:[%s7 + $0x28] sm:$0xff]
    %v159 = vld [vmem:[%s7 + $0x30] sm:$0xff]
    %v160 = vld [vmem:[%s7 + $0x38] sm:$0xff]
    %v161 = vld [vmem:[%s7 + $0x40] sm:$0xff]
    %v162 = vld [vmem:[%s7 + $0x48] sm:$0xff]
    %v163 = vld [vmem:[%s7 + $0x50] sm:$0xff]
    %v164 = vld [vmem:[%s7 + $0x58] sm:$0xff]
    %v165 = vld [vmem:[%s7 + $0x60] sm:$0xff]
    %v166 = vld [vmem:[%s7 + $0x68] sm:$0xff]
    %v167 = vld [vmem:[%s7 + $0x70] sm:$0xff]
    %v168 = vld [vmem:[%s7 + $0x78] sm:$0xff]
    %v169 = vld [vmem:[%s8] sm:$0x1]
    %v171 = vperm.slane %v169, 0
    %173 = vmatpush.msra.mxu0 %v168
    %174 = vmatpush.msra.mxu0 %v167
    %175 = vmatpush.msra.mxu0 %v166
    %176 = vmatpush.msra.mxu0 %v165
    %177 = vmatpush.msra.mxu0 %v164
    %178 = vmatpush.msra.mxu0 %v163
    %179 = vmatpush.msra.mxu0 %v162
    %180 = vmatpush.msra.mxu0 %v161
    %181 = vmatpush.msra.mxu0 %v160
    %182 = vmatpush.msra.mxu0 %v159
    %183 = vmatpush.msra.mxu0 %v158
    %184 = vmatpush.msra.mxu0 %v157
    %185 = vmatpush.msra.mxu0 %v156
    %186 = vmatpush.msra.mxu0 %v155
    %187 = vmatpush.msra.mxu0 %v154
    %188 = vmatpush.msra.mxu0 %v153
    %189 = vmatmul.f32.gmra.mxu0 %v110
    %v190 = vpop.f32.mrf.mxu0
    %v191 = vadd.f32 %v171, %v190
    %192 = vdwg.mxu0
    %193 = vst.msk [vmem:[#allocation4] sm:$0xff] %vm151, %v191
    // Predicated region
    $region38: #{tpu_custom_call.1} parent=1 // pred_check
      _
    $region39: #{tpu_custom_call.1} parent=1 // pred_check_branch
      %195 = sbr.rel (0) target = $region41
    $region40: #{tpu_custom_call.1} parent=1 // pred_region
      %197 = vsyncadd [#allocation3], 0
      %s199 = sshll.u32 [#allocation2], 4
      %s200 = int_to_ptr.vmem [resolvable:$true] %s199
      %s201 = sshll.u32 %s9, 4
      %s202 = int_to_ptr.hbm [resolvable:$true] %s201
      %204 = dma.vmem_to_hbm [thread:$0]  %s200, 128, %s202, [#allocation3]
    $region41: #{tpu_custom_call.1} parent=1 // pred_fallthru
      _
    // Predicated region
    $region42: #{tpu_custom_call.1} parent=1 // pred_check
      _
    $region43: #{tpu_custom_call.1} parent=1 // pred_check_branch
      %206 = sbr.rel (0) target = $region45
    $region44: #{tpu_custom_call.1} parent=1 // pred_region
      %208 = vsyncadd [#allocation5], 0
      %s210 = sshll.u32 [#allocation4], 4
      %s211 = int_to_ptr.vmem [resolvable:$true] %s210
      %s212 = sshll.u32 %s10, 4
      %s213 = int_to_ptr.hbm [resolvable:$true] %s212
      %215 = dma.vmem_to_hbm [thread:$0]  %s211, 128, %s213, [#allocation5]
    $region45: #{tpu_custom_call.1} parent=1 // pred_fallthru
      _
    // Predicated region
    $region46: #{tpu_custom_call.1} parent=1 // pred_check
      _
    $region47: #{tpu_custom_call.1} parent=1 // pred_check_branch
      %217 = sbr.rel (0) target = $region49
    $region48: #{tpu_custom_call.1} parent=1 // pred_region
      %219 = dma.done [#allocation3], 128
    $region49: #{tpu_custom_call.1} parent=1 // pred_fallthru
      _
    // Predicated region
    $region50: #{tpu_custom_call.1} parent=1 // pred_check
      _
    $region51: #{tpu_custom_call.1} parent=1 // pred_check_branch
      %221 = sbr.rel (0) target = $region53
    $region52: #{tpu_custom_call.1} parent=1 // pred_region
      %223 = dma.done [#allocation5], 128
    $region53: #{tpu_custom_call.1} parent=1 // pred_fallthru
      _
    %224 = vsyncpa [#allocation3], 1
    %225 = vsyncpa [#allocation5], 1

</llo_original>
